<compile_context>
chip_gen: v6e
topology: v6e:2x2x1
jax: 0.10.0
libtpu: 0.0.40
codegen_flags: <defaults>
</compile_context>

<pallas_src>
import jax
import jax.numpy as jnp
from jax.experimental import pallas as pl
from jax.experimental.pallas import tpu as pltpu

EPS = 1e-12
_SUB, _LANE = 8, 128
_CHUNK = _SUB * _LANE          # 1024 elements per (8, 128) vreg-shaped chunk
_NUM_CORES = 2                 # parallel partials (helps v7x; harmless on 1-TC chips)


def _entropy_kernel(x_ref, acc_ref):
    i = pl.program_id(1)

    @pl.when(i == 0)
    def _():
        acc_ref[...] = jnp.zeros_like(acc_ref)

    x = x_ref[...].astype(jnp.float32)                    # (ct, 8, 128)
    y = x * jnp.log(x + EPS)                              # VPU mul + EUP log
    acc_ref[...] += jnp.sum(y, axis=0, keepdims=True)     # vreg-wise adds -> (1, 8, 128)


def entropy_loss(x_nchw, *, chunk_tile=512):
    """x_nchw: (B, C, H, W) float array. Returns scalar float32 loss."""
    b, c, h, w = x_nchw.shape
    denom = b * h * w                    # mean is taken over (B, H, W) positions
    total = b * c * h * w

    num_chunks = pl.cdiv(total, _CHUNK)
    ct = max(1, min(chunk_tile, pl.cdiv(num_chunks, _NUM_CORES)))
    inner = pl.cdiv(num_chunks, _NUM_CORES * ct)
    padded_chunks = _NUM_CORES * ct * inner

    flat = jnp.ravel(x_nchw)
    pad = padded_chunks * _CHUNK - total
    if pad:
        flat = jnp.pad(flat, (0, pad))   # zeros are exact: 0 * log(0 + eps) == 0
    x3d = flat.reshape(padded_chunks, _SUB, _LANE)

    partials = pl.pallas_call(
        _entropy_kernel,
        out_shape=jax.ShapeDtypeStruct((_NUM_CORES, _SUB, _LANE), jnp.float32),
        grid_spec=pltpu.PrefetchScalarGridSpec(
            num_scalar_prefetch=0,
            grid=(_NUM_CORES, inner),
            in_specs=[pl.BlockSpec((ct, _SUB, _LANE),
                                   lambda cid, i: (cid * inner + i, 0, 0))],
            out_specs=pl.BlockSpec((1, _SUB, _LANE),
                                   lambda cid, i: (cid, 0, 0)),
        ),
        compiler_params=pltpu.CompilerParams(
            dimension_semantics=("parallel", "arbitrary")),
    )(x3d)

    # Final cross-lane reduce + scale done once, outside the hot loop.
    return -jnp.sum(partials) / jnp.float32(denom)


if __name__ == "__main__":
    key = jax.random.PRNGKey(0)
    B, C, H, W = 2, 4, 16, 16
    # softmax over channel dim so values look like probabilities (positive)
    logits = jax.random.normal(key, (B, C, H, W), dtype=jnp.float32)
    x = jax.nn.softmax(logits, axis=1)

    loss = jax.block_until_ready(entropy_loss(x))

    # reference in plain JAX (mirrors the PyTorch forward)
    ref = jnp.mean(-jnp.sum(x * jnp.log(x + EPS), axis=1))
    assert jnp.allclose(loss, ref, rtol=1e-5, atol=1e-6), (loss, ref)

    print("KERNEL_OK")
</pallas_src>

<mosaic_0001>
module attributes {stable_mosaic.version = 11 : i64} {
  func.func @_entropy_kernel(%arg0: i32, %arg1: i32, %arg2: memref<1x8x128xf32, #tpu.memory_space<vmem>>, %arg3: memref<1x8x128xf32, #tpu.memory_space<vmem>>) attributes {dimension_semantics = [#tpu.dimension_semantics<parallel>, #tpu.dimension_semantics<arbitrary>], iteration_bounds = array<i64: 2, 1>, scalar_prefetch = 0 : i64, scratch_operands = 0 : i64, tpu.core_type = #tpu.core_type<tc>, window_params = [{transform_indices = @transform_0, window_bounds = array<i64: 1, 8, 128>}, {transform_indices = @transform_1, window_bounds = array<i64: 1, 8, 128>}]} {
    %c0_i32 = arith.constant 0 : i32
    %0 = arith.cmpi eq, %arg1, %c0_i32 : i32
    %1 = arith.extui %0 : i1 to i32
    %c0_i32_0 = arith.constant 0 : i32
    %2 = arith.cmpi ne, %1, %c0_i32_0 : i32
    scf.if %2 {
      %cst_10 = arith.constant 0.000000e+00 : f32
      %13 = vector.broadcast %cst_10 : f32 to vector<1x8x128xf32>
      %c0_11 = arith.constant 0 : index
      %c0_12 = arith.constant 0 : index
      %c0_13 = arith.constant 0 : index
      %14 = vector.load %arg3[%c0_11, %c0_12, %c0_13] : memref<1x8x128xf32, #tpu.memory_space<vmem>>, vector<1x8x128xf32>
      tpu.vector_store %arg3[%c0_11, %c0_12, %c0_13], %13 {strides = array<i32>} : memref<1x8x128xf32, #tpu.memory_space<vmem>>, vector<1x8x128xf32>,
    } else {
    }
    %c0 = arith.constant 0 : index
    %c0_1 = arith.constant 0 : index
    %c0_2 = arith.constant 0 : index
    %3 = vector.load %arg2[%c0, %c0_1, %c0_2] : memref<1x8x128xf32, #tpu.memory_space<vmem>>, vector<1x8x128xf32>
    %cst = arith.constant 9.99999996E-13 : f32
    %4 = vector.broadcast %cst : f32 to vector<1x8x128xf32>
    %5 = arith.addf %3, %4 : vector<1x8x128xf32>
    %6 = math.log %5 : vector<1x8x128xf32>
    %7 = arith.mulf %3, %6 : vector<1x8x128xf32>
    %c0_3 = arith.constant 0 : index
    %c0_4 = arith.constant 0 : index
    %c0_5 = arith.constant 0 : index
    %8 = vector.load %arg3[%c0_3, %c0_4, %c0_5] : memref<1x8x128xf32, #tpu.memory_space<vmem>>, vector<1x8x128xf32>
    %cst_6 = arith.constant dense<0.000000e+00> : vector<8x128xf32>
    %9 = vector.multi_reduction <add>, %7, %cst_6 [0] : vector<1x8x128xf32> to vector<8x128xf32>
    %10 = vector.shape_cast %9 : vector<8x128xf32> to vector<1x8x128xf32>
    %11 = arith.addf %8, %10 : vector<1x8x128xf32>
    %c0_7 = arith.constant 0 : index
    %c0_8 = arith.constant 0 : index
    %c0_9 = arith.constant 0 : index
    %12 = vector.load %arg3[%c0_7, %c0_8, %c0_9] : memref<1x8x128xf32, #tpu.memory_space<vmem>>, vector<1x8x128xf32>
    tpu.vector_store %arg3[%c0_7, %c0_8, %c0_9], %11 {strides = array<i32>} : memref<1x8x128xf32, #tpu.memory_space<vmem>>, vector<1x8x128xf32>,
    return
  }
  func.func @transform_0(%arg0: i32, %arg1: i32) -> (i32, i32, i32) {
    %c1_i32 = arith.constant 1 : i32
    %0 = arith.muli %arg0, %c1_i32 : i32
    %1 = arith.addi %0, %arg1 : i32
    %c0_i32 = arith.constant 0 : i32
    %c0_i32_0 = arith.constant 0 : i32
    %c0_i32_1 = arith.constant 0 : i32
    return %1, %c0_i32, %c0_i32_0 : i32, i32, i32
  }
  func.func @transform_1(%arg0: i32, %arg1: i32) -> (i32, i32, i32) {
    %c0_i32 = arith.constant 0 : i32
    %c0_i32_0 = arith.constant 0 : i32
    %c0_i32_1 = arith.constant 0 : i32
    return %arg0, %c0_i32, %c0_i32_0 : i32, i32, i32
  }
}

</mosaic_0001>

<llo_original>
// kernel: tpu_custom_call.1
$region0: #{tpu_custom_call.1}
  #allocation0 [shape = 'u32[]', space=smem, size = 0x4, offset = 0x4, fixed_abs, tag = 'smem constant byte address 0x4 - core index']
  #allocation1 [shape = 'u32[144,128]{1,0:T(1,128)}', space=vmem, size = 0x12000, scoped, tag = 'internal scratch']
  %s0 = inlined_call_operand.hbm [shape: f32[2,8,128], index: 0, kind: input, shape index: {}]
  %s1 = inlined_call_operand.hbm [shape: f32[2,8,128], index: 1, kind: output, shape index: {}]
  %s2 = sld [smem:[#allocation0]]
  $region45: #{tpu_custom_call.1} parent=0
    _
  %s4 = ssub.s32 1, %s2
  %s5 = scalar_select 0, %s4, %s2
  $region1: #{tpu_custom_call.1} parent=0
    #allocation2 [shape = 'u8[8192]{0}', space=vmem, size = 0x2000, scoped, tag = 'input window, operand 0']
    #allocation3 [shape = 's32[2]{0}', space=sflag, size = 0x8, scoped, tag = 'scoped memory for tpu_custom_call.1']
    #allocation4 [shape = 's32[2]{0}', space=sflag, size = 0x8, scoped, tag = 'scoped memory for tpu_custom_call.1']
    #allocation5 [shape = 'u8[8192]{0}', space=vmem, size = 0x2000, scoped, tag = 'output window, operand 0']
    %6 = vsyncpa [#allocation3], 0
    %s7 = scalar_lea.sflag [#allocation3], 1
    %8 = vsyncpa %s7, 0
    %9 = vsyncpa [#allocation4], 0
    %s10 = scalar_lea.sflag [#allocation4], 1
    %11 = vsyncpa %s10, 0
    loop: start=0, step=1, limit=4
    $region2: #{tpu_custom_call.1} parent=1 // loop_pre_header
      _
    $region3: #{tpu_custom_call.1} parent=1 // loop_header
      %s13 = sphi 0, %s17
      %p14 = scmp.ge.s32.totalorder %s13, 4
      %s20 = sphi 0, %s32
      %s21 = sphi 0, %s28
      %s22 = sphi 0, %s20
      %s23 = sphi 0, %s21
      %s24 = sphi 0, %s22
      %s25 = sphi 0, %s23
      %s37 = sphi 0, %s39
      %s40 = sphi 0, %s37
      %s41 = sphi 0, %s40
      %s57 = sphi 0, %s41
      %s63 = sphi 0, %s65
      %s66 = sphi 0, %s63
      %s67 = sphi 0, %s66
      %s83 = sphi 0, %s67
    $region4: #{tpu_custom_call.1} parent=1 // loop_header_branch
      %16 = sbr.rel (%p14) target = $region8
    $region5: #{tpu_custom_call.1} parent=1 // loop_body
      %s18 = ssub.s32 %s13, 1
      %s19 = ssub.s32 %s13, 2
      %s26 = sadd.s32 1, %s21
      %p27 = scmp.ge.s32.totalorder %s26, 1
      %s28 = scalar_select %p27, 0, %s26
      %s29 = sadd.s32 1, %s20
      %s30 = scalar_select %p27, %s29, %s20
      %p31 = scmp.ge.s32.totalorder %s30, 2
      %s32 = scalar_select %p31, 0, %s30
      %s33 = sadd.s32 %s20, %s21
      %s34 = sadd.s32 %s32, %s28
      %s35 = ssub.s32 %s33, %s34
      %p36 = scmp.eq.s32.totalorder %s35, 0
      %s38 = sadd.s32 %s37, 1
      %s39 = scalar_select %p36, %s37, %s38
      %p42 = pneg %p36
      %p43 = scmp.eq.s32.totalorder %s13, 1
      %p44 = por %p42, %p43
      %p45 = scmp.ne.s32.totalorder %s37, %s40
      %p46 = scmp.eq.s32.totalorder %s13, 0
      %p47 = por %p45, %p46
      %p48 = scmp.ne.s32.totalorder %s37, %s40
      %p49 = scmp.eq.s32.totalorder %s18, 1
      %p50 = por %p48, %p49
      %p51 = scmp.ne.s32.totalorder %s40, %s41
      %p52 = scmp.eq.s32.totalorder %s18, 0
      %p53 = por %p51, %p52
      %p54 = scmp.ne.s32.totalorder %s40, %s41
      %p55 = scmp.eq.s32.totalorder %s19, 1
      %p56 = por %p54, %p55
      %p58 = scmp.ne.s32.totalorder %s41, %s57
      %p59 = scmp.eq.s32.totalorder %s19, 0
      %p60 = por %p58, %p59
      %s61 = ssub.s32 %s20, %s32
      %p62 = scmp.eq.s32.totalorder %s61, 0
      %s64 = sadd.s32 %s63, 1
      %s65 = scalar_select %p62, %s63, %s64
      %p68 = pneg %p62
      %p69 = scmp.eq.s32.totalorder %s13, 1
      %p70 = por %p68, %p69
      %p71 = scmp.ne.s32.totalorder %s63, %s66
      %p72 = scmp.eq.s32.totalorder %s13, 0
      %p73 = por %p71, %p72
      %p74 = scmp.ne.s32.totalorder %s63, %s66
      %p75 = scmp.eq.s32.totalorder %s18, 1
      %p76 = por %p74, %p75
      %p77 = scmp.ne.s32.totalorder %s66, %s67
      %p78 = scmp.eq.s32.totalorder %s18, 0
      %p79 = por %p77, %p78
      %p80 = scmp.ne.s32.totalorder %s66, %s67
      %p81 = scmp.eq.s32.totalorder %s19, 1
      %p82 = por %p80, %p81
      %p84 = scmp.ne.s32.totalorder %s67, %s83
      %p85 = scmp.eq.s32.totalorder %s19, 0
      %p86 = por %p84, %p85
      %p87 = scmp.le.s32.totalorder 1, %s13
      %p88 = scmp.lt.s32.totalorder %s13, 3
      %p89 = pnand %p87, %p88
      %p90 = pneg %p89
      // Predicated region
      $region9: #{tpu_custom_call.1} parent=5 // pred_check
        _
      $region10: #{tpu_custom_call.1} parent=5 // pred_check_branch
        %92 = sbr.rel (%p89) target = $region12
      $region11: #{tpu_custom_call.1} parent=5 // pred_region
        %s93 = ssub.s32 %s13, 1
      $region12: #{tpu_custom_call.1} parent=5 // pred_fallthru
        _
      %p94 = scmp.lt.s32.totalorder %s13, 2
      // Predicated region
      $region13: #{tpu_custom_call.1} parent=5 // pred_check
        %p95 = pneg %p94
      $region14: #{tpu_custom_call.1} parent=5 // pred_check_branch
        %97 = sbr.rel (%p95) target = $region16
      $region15: #{tpu_custom_call.1} parent=5 // pred_region
        // Predicated region
        $region17: #{tpu_custom_call.1} parent=15 // pred_check
          %p98 = pneg %p47
        $region18: #{tpu_custom_call.1} parent=15 // pred_check_branch
          %100 = sbr.rel (%p98) target = $region20
        $region19: #{tpu_custom_call.1} parent=15 // pred_region
          %s101 = sand.u32 %s37, 1
          %s102 = scalar_lea.sflag [#allocation3], %s101
          %s103 = sand.u32 %s37, 1
          %s104 = smul.addr %s103, 8
          %s105 = scalar_lea.vmem [#allocation2], %s104
          %s106 = sadd.s32 %s20, %s21
          %s108 = ssub.s32 128, 128
          %109 = vsyncadd %s102, %s108
          %s110 = smul.addr %s106, 128
          %s111 = scalar_lea.hbm %s0, %s110
          %s113 = sshll.u32 %s105, 4
          %s114 = int_to_ptr.vmem [resolvable:$true] %s113
          %116 = dma.hbm_to_vmem [thread:$0]  %s111, 128, %s114, %s102
        $region20: #{tpu_custom_call.1} parent=15 // pred_fallthru
          _
      $region16: #{tpu_custom_call.1} parent=5 // pred_fallthru
        _
      %p117 = scmp.le.s32.totalorder 1, %s13
      %p118 = scmp.lt.s32.totalorder %s13, 3
      %p119 = pnand %p117, %p118
      %p120 = pneg %p119
      // Predicated region
      $region21: #{tpu_custom_call.1} parent=5 // pred_check
        _
      $region22: #{tpu_custom_call.1} parent=5 // pred_check_branch
        %122 = sbr.rel (%p119) target = $region24
      $region23: #{tpu_custom_call.1} parent=5 // pred_region
        %s123 = ssub.s32 %s13, 1
        %s124 = sand.u32 %s40, 1
        %s125 = scalar_lea.sflag [#allocation3], %s124
        %s126 = sand.u32 %s40, 1
        %s127 = smul.addr %s126, 8
        %s128 = scalar_lea.vmem [#allocation2], %s127
        // Predicated region
        $region25: #{tpu_custom_call.1} parent=23 // pred_check
          %p129 = pneg %p53
        $region26: #{tpu_custom_call.1} parent=23 // pred_check_branch
          %131 = sbr.rel (%p129) target = $region28
        $region27: #{tpu_custom_call.1} parent=23 // pred_region
          %132 = dma.done %s125, 128
        $region28: #{tpu_custom_call.1} parent=23 // pred_fallthru
          _
        %s133 = sand.u32 %s40, 1
        %s134 = scalar_lea.sflag [#allocation3], %s133
        %s135 = sand.u32 %s40, 1
        %s136 = smul.addr %s135, 8
        %s137 = scalar_lea.vmem [#allocation2], %s136
        %p138 = pneg %p53
        %p139 = pneg %p50
        %p140 = pneg %p79
        %p141 = pneg %p76
        %s142 = sand.u32 %s66, 1
        %s143 = scalar_lea.sflag [#allocation4], %s142
        %s144 = sand.u32 %s66, 1
        %s145 = smul.addr %s144, 8
        %s146 = scalar_lea.vmem [#allocation5], %s145
        %s147 = sadd.s32 %s22, %s23
        %p148 = scmp.eq.s32.totalorder %s23, 0
        // Predicated region
        $region29: #{tpu_custom_call.1} parent=23 // pred_check
          %p149 = pneg %p148
        $region30: #{tpu_custom_call.1} parent=23 // pred_check_branch
          %151 = sbr.rel (%p149) target = $region32
        $region31: #{tpu_custom_call.1} parent=23 // pred_region
          %152 = vst [vmem:[%s146] sm:$0xff] 0.0
        $region32: #{tpu_custom_call.1} parent=23 // pred_fallthru
          _
        %v153 = vld [vmem:[%s128] sm:$0xff]
        %v154 = vadd.f32 %v153, 1e-12
        %v155 = vlog2.pop %v154
        %v156 = vmul.f32 %v155, 0.6931472
        %v157 = vmul.f32 %v153, %v156
        %v158 = vld [vmem:[%s146] sm:$0xff]
        %v159 = vadd.f32 %v157, 0.0
        %v160 = vadd.f32 %v158, %v159
        %161 = vst [vmem:[%s146] sm:$0xff] %v160
        %s162 = sand.u32 %s66, 1
        %s163 = scalar_lea.sflag [#allocation4], %s162
        %s164 = sand.u32 %s66, 1
        %s165 = smul.addr %s164, 8
        %s166 = scalar_lea.vmem [#allocation5], %s165
        // Predicated region
        $region33: #{tpu_custom_call.1} parent=23 // pred_check
          %p167 = pneg %p76
        $region34: #{tpu_custom_call.1} parent=23 // pred_check_branch
          %169 = sbr.rel (%p167) target = $region36
        $region35: #{tpu_custom_call.1} parent=23 // pred_region
          %s171 = ssub.s32 128, 128
          %172 = vsyncadd %s163, %s171
          %s173 = smul.addr %s22, 128
          %s174 = scalar_lea.hbm %s1, %s173
          %s176 = sshll.u32 %s166, 4
          %s177 = int_to_ptr.vmem [resolvable:$true] %s176
          %179 = dma.vmem_to_hbm [thread:$0]  %s177, 128, %s174, %s163
        $region36: #{tpu_custom_call.1} parent=23 // pred_fallthru
          _
      $region24: #{tpu_custom_call.1} parent=5 // pred_fallthru
        _
      %p180 = scmp.le.s32.totalorder 2, %s13
      // Predicated region
      $region37: #{tpu_custom_call.1} parent=5 // pred_check
        %p181 = pneg %p180
      $region38: #{tpu_custom_call.1} parent=5 // pred_check_branch
        %183 = sbr.rel (%p181) target = $region40
      $region39: #{tpu_custom_call.1} parent=5 // pred_region
        %s184 = ssub.s32 %s13, 2
        // Predicated region
        $region41: #{tpu_custom_call.1} parent=39 // pred_check
          %p185 = pneg %p82
        $region42: #{tpu_custom_call.1} parent=39 // pred_check_branch
          %187 = sbr.rel (%p185) target = $region44
        $region43: #{tpu_custom_call.1} parent=39 // pred_region
          %s188 = sand.u32 %s67, 1
          %s189 = scalar_lea.sflag [#allocation4], %s188
          %s190 = sand.u32 %s67, 1
          %s191 = smul.addr %s190, 8
          %s192 = scalar_lea.vmem [#allocation5], %s191
          %193 = dma.done %s189, 128
        $region44: #{tpu_custom_call.1} parent=39 // pred_fallthru
          _
      $region40: #{tpu_custom_call.1} parent=5 // pred_fallthru
        _
    $region6: #{tpu_custom_call.1} parent=1 // loop_footer
      %s17 = sadd.s32 1, %s13
    $region7: #{tpu_custom_call.1} parent=1 // loop_footer_branch
      %12 = sbr.rel target = $region3
    $region8: #{tpu_custom_call.1} parent=1 // loop_exit
      _
    %194 = vsyncpa [#allocation3], 1
    %s195 = scalar_lea.sflag [#allocation3], 1
    %196 = vsyncpa %s195, 1
    %197 = vsyncpa [#allocation4], 1
    %s198 = scalar_lea.sflag [#allocation4], 1
    %199 = vsyncpa %s198, 1

</llo_original>
